<compile_context>
chip_gen: v7x
topology: tpu7x:2x2x1
jax: 0.10.0
libtpu: 0.0.40
codegen_flags: <defaults>
</compile_context>

<pallas_src>
import collections
import functools

import numpy as np

import jax
import jax.numpy as jnp
from jax.experimental import pallas as pl
from jax.experimental.pallas import tpu as pltpu

LANE = 128

GraphMeta = collections.namedtuple(
    "GraphMeta", ["n", "n_pad", "tm", "tk", "num_steps", "fused"])


def _round_up(n, m):
    return ((n + m - 1) // m) * m


def _pick_tile(n, cap):
    """Largest multiple of 128 that divides n and is <= cap (n % 128 == 0)."""
    t = min(cap, n)
    t -= t % LANE
    t = max(t, LANE)
    while n % t:
        t -= LANE
    return t


def _vmem_limit_bytes():
    """Per-generation scoped-VMEM limit: ~3/4 of capacity, capped at 100 MiB."""
    try:
        cap = int(pltpu.get_tpu_info().vmem_capacity_bytes)
    except Exception:
        cap = 64 * 1024 * 1024            # conservative (v7x-sized) fallback
    return int(min((cap * 3) // 4, 100 * 1024 * 1024))


# ---------------------------------------------------------------------------
# Kernels
# ---------------------------------------------------------------------------
def _fused_encoder_kernel(a_ref, xw1_ref, b1_ref, wcat_ref, bcat_ref, out_ref):
    """Both GCN layers with A resident in VMEM (A read from HBM once).

    h           = relu(A @ (x W1) + b1)
    [mu|logstd] = A @ (h @ [Wmu|Wls]) + [bmu|bls]
    """
    a = a_ref[...]                                            # bf16, resident
    h = jnp.dot(a, xw1_ref[...], preferred_element_type=jnp.float32)
    h = jnp.maximum(h + b1_ref[...], 0.0)                     # f32 epilogue
    hw = jnp.dot(h.astype(jnp.bfloat16), wcat_ref[...],
                 preferred_element_type=jnp.float32)
    out = jnp.dot(a, hw.astype(jnp.bfloat16),
                  preferred_element_type=jnp.float32) + bcat_ref[...]
    out_ref[...] = out.astype(out_ref.dtype)


def _gcn_sweep_kernel(row_ref, col_ref, first_ref, last_ref,
                      a_ref, b_ref, bias_ref, out_ref, acc_ref, *, apply_relu):
    """One CSR step: acc += A_block @ B_block; epilogue on a row tile's last block."""
    s = pl.program_id(0)

    @pl.when(first_ref[s] == 1)
    def _():
        acc_ref[...] = jnp.zeros_like(acc_ref)

    acc_ref[...] += jnp.dot(a_ref[...], b_ref[...],
                            preferred_element_type=jnp.float32)

    @pl.when(last_ref[s] == 1)
    def _():
        y = acc_ref[...] + bias_ref[...]                      # f32 epilogue
        if apply_relu:
            y = jnp.maximum(y, 0.0)
        out_ref[...] = y.astype(out_ref.dtype)


def _gcn_sweep(a_blocks, b, bias, schedule, *, num_steps, tm, tk,
               out_dtype, apply_relu, vmem_limit):
    """out = A @ b + bias (optional relu), flattened grid over nonzero A blocks."""
    nrt = a_blocks.shape[0]
    n_pad = nrt * tm
    width = b.shape[1]
    row_id, col_id, first, last = schedule

    # A is block-major [nrt, nkt, tm, tk]: each (tm, tk) block is one
    # contiguous HBM region -> efficient DMA for the bandwidth-bound stream.
    a_spec = pl.BlockSpec(
        (None, None, tm, tk),
        lambda s, row, col, fst, lst: (row[s], col[s], 0, 0))
    b_spec = pl.BlockSpec(
        (tk, width), lambda s, row, col, fst, lst: (col[s], 0))
    bias_spec = pl.BlockSpec(
        bias.shape, lambda s, row, col, fst, lst: (0, 0))
    out_spec = pl.BlockSpec(
        (tm, width), lambda s, row, col, fst, lst: (row[s], 0))

    grid_spec = pltpu.PrefetchScalarGridSpec(
        num_scalar_prefetch=4,
        grid=(num_steps,),
        in_specs=[a_spec, b_spec, bias_spec],
        out_specs=out_spec,
        scratch_shapes=[pltpu.VMEM((tm, width), jnp.float32)],
    )
    return pl.pallas_call(
        functools.partial(_gcn_sweep_kernel, apply_relu=apply_relu),
        out_shape=jax.ShapeDtypeStruct((n_pad, width), out_dtype),
        grid_spec=grid_spec,
        compiler_params=pltpu.CompilerParams(
            # Single flattened CSR axis carries the accumulator -> arbitrary.
            dimension_semantics=("arbitrary",),
            vmem_limit_bytes=vmem_limit,
        ),
    )(row_id, col_id, first, last, a_blocks, b, bias)


# ---------------------------------------------------------------------------
# One-time graph preprocessing (hoisted out of the forward hot path)
# ---------------------------------------------------------------------------
def normalized_adjacency(edge_index, num_nodes):
    """Dense GCN normalization D^-1/2 (A + I) D^-1/2."""
    a = jnp.zeros((num_nodes, num_nodes), jnp.float32)
    a = a.at[edge_index[0], edge_index[1]].set(1.0)
    idx = jnp.arange(num_nodes)
    a = a.at[idx, idx].set(1.0)                               # self-loops
    deg = a.sum(axis=1)
    dinv = jnp.where(deg > 0, jax.lax.rsqrt(deg), 0.0)
    return dinv[:, None] * a * dinv[None, :]


def prepare_graph(edge_index, num_nodes, *, tm_cap=1024, tk_cap=2048,
                  force_streamed=False):
    """Per-static-graph preprocessing; call once and reuse across forwards.

    Returns (graph_data, meta):
      * fused path (A fits VMEM): padded bf16 A kept resident by one kernel.
      * streamed path: block-major bf16 A [nrt, nkt, tm, tk] plus a CSR-style
        flattened schedule over nonzero blocks (scalar-prefetch tables).
    """
    n = int(num_nodes)
    n_pad = max(_round_up(n, LANE), LANE)

    a = normalized_adjacency(edge_index, n)
    a_pad = jnp.zeros((n_pad, n_pad), jnp.float32).at[:n, :n].set(a)

    vmem_limit = _vmem_limit_bytes()
    a_bytes = n_pad * n_pad * 2                               # bf16
    fused = (not force_streamed) and (3 * a_bytes <= vmem_limit)

    if fused:
        data = {"a": a_pad.astype(jnp.bfloat16)}
        meta = GraphMeta(n=n, n_pad=n_pad, tm=n_pad, tk=n_pad,
                         num_steps=1, fused=True)
        return data, meta

    tm = _pick_tile(n_pad, tm_cap)
    tk = _pick_tile(n_pad, tk_cap)
    nrt, nkt = n_pad // tm, n_pad // tk

    a_np = np.asarray(a_pad)
    blocks = np.ascontiguousarray(
        a_np.reshape(nrt, tm, nkt, tk).transpose(0, 2, 1, 3))  # block-major
    # TODO(synk): the nonzero-block mask could be built directly from
    # edge_index integer math; the dense reduction is fine here because this
    # runs once per static graph, off the hot path.
    nz = np.abs(blocks).sum(axis=(2, 3)) > 0                  # [nrt, nkt]

    rows, cols, first, last = [], [], [], []
    for i in range(nrt):
        js = np.nonzero(nz[i])[0]
        if js.size == 0:              # keep every output row tile written
            js = np.array([0])
        for t, j in enumerate(js):
            rows.append(i)
            cols.append(int(j))
            first.append(1 if t == 0 else 0)
            last.append(1 if t == js.size - 1 else 0)

    data = {
        "a_blocks": jnp.asarray(blocks, dtype=jnp.bfloat16),
        "row_id": jnp.asarray(rows, dtype=jnp.int32),
        "col_id": jnp.asarray(cols, dtype=jnp.int32),
        "first": jnp.asarray(first, dtype=jnp.int32),
        "last": jnp.asarray(last, dtype=jnp.int32),
    }
    meta = GraphMeta(n=n, n_pad=n_pad, tm=tm, tk=tk,
                     num_steps=len(rows), fused=False)
    return data, meta


# ---------------------------------------------------------------------------
# Parameters & forward
# ---------------------------------------------------------------------------
def init_params(key, in_channels, out_channels):
    ks = jax.random.split(key, 6)
    h2 = 2 * out_channels
    s = 0.1
    return dict(
        w1=jax.random.normal(ks[0], (in_channels, h2), jnp.float32) * s,
        b1=jax.random.normal(ks[1], (1, h2), jnp.float32) * s,
        wmu=jax.random.normal(ks[2], (h2, out_channels), jnp.float32) * s,
        bmu=jax.random.normal(ks[3], (1, out_channels), jnp.float32) * s,
        wls=jax.random.normal(ks[4], (h2, out_channels), jnp.float32) * s,
        bls=jax.random.normal(ks[5], (1, out_channels), jnp.float32) * s,
    )


def encoder_forward(x, params, graph, *, meta):
    """Encoder.forward(x, edge_index) -> (mu, logstd); graph pre-built once."""
    n, n_pad = meta.n, meta.n_pad
    h_out = params["wmu"].shape[1]                  # out_channels
    h2 = params["w1"].shape[1]                      # 2 * out_channels
    h2p = _round_up(h2, LANE)                       # lane-dense hidden width
    cp = _round_up(2 * h_out, LANE)                 # lane-dense packed mu|logstd
    vmem_limit = _vmem_limit_bytes()

    # Tiny feature transforms stay in the wrapper (associativity); kernels'
    # MXU work is then pure bf16 A @ B with f32 accumulation.
    x_pad = jnp.zeros((n_pad, x.shape[1]), jnp.float32).at[:n].set(x)
    w1p = jnp.zeros((x.shape[1], h2p), jnp.float32).at[:, :h2].set(params["w1"])
    b1p = jnp.zeros((1, h2p), jnp.float32).at[:, :h2].set(params["b1"])
    xw1 = jnp.dot(x_pad, w1p,
                  preferred_element_type=jnp.float32).astype(jnp.bfloat16)

    # Fused mu|logstd weights -> one A sweep produces both outputs.
    wcat = (jnp.zeros((h2p, cp), jnp.float32)
            .at[:h2, :h_out].set(params["wmu"])
            .at[:h2, h_out:2 * h_out].set(params["wls"])).astype(jnp.bfloat16)
    bcat = (jnp.zeros((1, cp), jnp.float32)
            .at[:, :h_out].set(params["bmu"])
            .at[:, h_out:2 * h_out].set(params["bls"]))

    if meta.fused:
        # A resident in VMEM: both layers in one kernel, A read from HBM once.
        packed = pl.pallas_call(
            _fused_encoder_kernel,
            out_shape=jax.ShapeDtypeStruct((n_pad, cp), jnp.float32),
            compiler_params=pltpu.CompilerParams(
                vmem_limit_bytes=vmem_limit),
        )(graph["a"], xw1, b1p, wcat, bcat)
    else:
        schedule = (graph["row_id"], graph["col_id"],
                    graph["first"], graph["last"])
        # Pass 1: h = relu(A @ (x W1) + b1)          (bf16, lane-dense)
        h = _gcn_sweep(graph["a_blocks"], xw1, b1p, schedule,
                       num_steps=meta.num_steps, tm=meta.tm, tk=meta.tk,
                       out_dtype=jnp.bfloat16, apply_relu=True,
                       vmem_limit=vmem_limit)
        # Fold the tiny h @ [Wmu|Wls] into the wrapper; pass 2 is then a pure
        # A sweep: [mu | logstd] = A @ (h Wcat) + [bmu|bls].
        hw = jnp.dot(h, wcat,
                     preferred_element_type=jnp.float32).astype(jnp.bfloat16)
        packed = _gcn_sweep(graph["a_blocks"], hw, bcat, schedule,
                            num_steps=meta.num_steps, tm=meta.tm, tk=meta.tk,
                            out_dtype=jnp.float32, apply_relu=False,
                            vmem_limit=vmem_limit)

    mu = packed[:n, :h_out]
    logstd = packed[:n, h_out:2 * h_out]
    return mu, logstd


def encoder_reference(x, edge_index, params):
    """Pure-JAX f32 reference of Encoder.forward."""
    a = normalized_adjacency(edge_index, x.shape[0])
    h = jnp.maximum(a @ (x @ params["w1"]) + params["b1"], 0.0)
    mu = a @ (h @ params["wmu"]) + params["bmu"]
    logstd = a @ (h @ params["wls"]) + params["bls"]
    return mu, logstd


if __name__ == "__main__":
    # Small deterministic example: N=200 nodes (padded to 256),
    # in_channels=16, out_channels=16.
    N, IN_C, OUT_C = 200, 16, 16

    key = jax.random.PRNGKey(0)
    kx, ke, kp = jax.random.split(key, 3)

    x = jax.random.normal(kx, (N, IN_C), jnp.float32)

    # Undirected ring plus a few random chords (kept symmetric).
    src = jnp.arange(N, dtype=jnp.int32)
    dst = (src + 1) % N
    r1 = jax.random.randint(ke, (64,), 0, N, dtype=jnp.int32)
    r2 = jax.random.randint(jax.random.fold_in(ke, 1), (64,), 0, N,
                            dtype=jnp.int32)
    edge_index = jnp.stack([jnp.concatenate([src, dst, r1, r2]),
                            jnp.concatenate([dst, src, r2, r1])], axis=0)

    params = init_params(kp, IN_C, OUT_C)
    mu_ref, logstd_ref = encoder_reference(x, edge_index, params)

    def check(mu, logstd):
        assert mu.shape == (N, OUT_C) and logstd.shape == (N, OUT_C)
        assert bool(jnp.all(jnp.isfinite(mu)))
        assert bool(jnp.all(jnp.isfinite(logstd)))
        err = max(float(jnp.max(jnp.abs(mu - mu_ref))),
                  float(jnp.max(jnp.abs(logstd - logstd_ref))))
        assert err < 5e-2, f"max abs error vs reference: {err}"

    # 1) Default path: one-time graph prep; at this size A fits VMEM, so the
    #    fused resident-A kernel is selected (A read from HBM once).
    data, meta = prepare_graph(edge_index, N)
    fwd = jax.jit(functools.partial(encoder_forward, meta=meta))
    mu, logstd = fwd(x, params, data)
    jax.block_until_ready((mu, logstd))
    check(mu, logstd)

    # 2) Streamed CSR path (used when A does not fit VMEM). 128-wide tiles
    #    here ONLY to exercise a multi-block schedule at this toy size; the
    #    production defaults are tm_cap=1024 / tk_cap=2048.
    data_s, meta_s = prepare_graph(edge_index, N, tm_cap=128, tk_cap=128,
                                   force_streamed=True)
    fwd_s = jax.jit(functools.partial(encoder_forward, meta=meta_s))
    mu_s, logstd_s = fwd_s(x, params, data_s)
    jax.block_until_ready((mu_s, logstd_s))
    check(mu_s, logstd_s)

    print("KERNEL_OK")
</pallas_src>

<mosaic_0001>
module attributes {stable_mosaic.version = 11 : i64} {
  func.func @_fused_encoder_kernel(%arg0: memref<256x256xbf16, #tpu.memory_space<vmem>>, %arg1: memref<256x128xbf16, #tpu.memory_space<vmem>>, %arg2: memref<1x128xf32, #tpu.memory_space<vmem>>, %arg3: memref<128x128xbf16, #tpu.memory_space<vmem>>, %arg4: memref<1x128xf32, #tpu.memory_space<vmem>>, %arg5: memref<256x128xf32, #tpu.memory_space<vmem>>) attributes {dimension_semantics = [], scalar_prefetch = 0 : i64, scratch_operands = 0 : i64, tpu.core_type = #tpu.core_type<tc>} {
    %c0 = arith.constant 0 : index
    %c0_0 = arith.constant 0 : index
    %0 = vector.load %arg0[%c0, %c0_0] : memref<256x256xbf16, #tpu.memory_space<vmem>>, vector<256x256xbf16>
    %c0_1 = arith.constant 0 : index
    %c0_2 = arith.constant 0 : index
    %1 = vector.load %arg1[%c0_1, %c0_2] : memref<256x128xbf16, #tpu.memory_space<vmem>>, vector<256x128xbf16>
    %cst = arith.constant dense<0.000000e+00> : vector<256x128xf32>
    %2 = tpu.matmul %0, %1, %cst {dimension_numbers = #tpu.dot_dimension_numbers<[1], [0], [0], [1], [0, 0, 1, 1], [], []>} : vector<256x256xbf16>, vector<256x128xbf16>, vector<256x128xf32> -> vector<256x128xf32>
    %c0_3 = arith.constant 0 : index
    %c0_4 = arith.constant 0 : index
    %3 = vector.load %arg2[%c0_3, %c0_4] : memref<1x128xf32, #tpu.memory_space<vmem>>, vector<1x128xf32>
    %4 = vector.broadcast %3 : vector<1x128xf32> to vector<256x128xf32>
    %5 = arith.addf %2, %4 : vector<256x128xf32>
    %cst_5 = arith.constant 0.000000e+00 : f32
    %6 = vector.broadcast %cst_5 : f32 to vector<256x128xf32>
    %7 = arith.maximumf %5, %6 : vector<256x128xf32>
    %8 = arith.truncf %7 : vector<256x128xf32> to vector<256x128xbf16>
    %c0_6 = arith.constant 0 : index
    %c0_7 = arith.constant 0 : index
    %9 = vector.load %arg3[%c0_6, %c0_7] : memref<128x128xbf16, #tpu.memory_space<vmem>>, vector<128x128xbf16>
    %cst_8 = arith.constant dense<0.000000e+00> : vector<256x128xf32>
    %10 = tpu.matmul %8, %9, %cst_8 {dimension_numbers = #tpu.dot_dimension_numbers<[1], [0], [0], [1], [0, 0, 1, 1], [], []>} : vector<256x128xbf16>, vector<128x128xbf16>, vector<256x128xf32> -> vector<256x128xf32>
    %11 = arith.truncf %10 : vector<256x128xf32> to vector<256x128xbf16>
    %cst_9 = arith.constant dense<0.000000e+00> : vector<256x128xf32>
    %12 = tpu.matmul %0, %11, %cst_9 {dimension_numbers = #tpu.dot_dimension_numbers<[1], [0], [0], [1], [0, 0, 1, 1], [], []>} : vector<256x256xbf16>, vector<256x128xbf16>, vector<256x128xf32> -> vector<256x128xf32>
    %c0_10 = arith.constant 0 : index
    %c0_11 = arith.constant 0 : index
    %13 = vector.load %arg4[%c0_10, %c0_11] : memref<1x128xf32, #tpu.memory_space<vmem>>, vector<1x128xf32>
    %14 = vector.broadcast %13 : vector<1x128xf32> to vector<256x128xf32>
    %15 = arith.addf %12, %14 : vector<256x128xf32>
    %c0_12 = arith.constant 0 : index
    %c0_13 = arith.constant 0 : index
    %16 = vector.load %arg5[%c0_12, %c0_13] : memref<256x128xf32, #tpu.memory_space<vmem>>, vector<256x128xf32>
    tpu.vector_store %arg5[%c0_12, %c0_13], %15 {strides = array<i32>} : memref<256x128xf32, #tpu.memory_space<vmem>>, vector<256x128xf32>,
    return
  }
}

</mosaic_0001>

<llo_original>
// kernel: encoder_forward.1
$region0: #{encoder_forward.1}
  #allocation0 [shape = 'u32[]', space=smem, size = 0x4, offset = 0x4, fixed_abs, tag = 'smem constant byte address 0x4 - core index']
  #allocation1 [shape = 'u32[144,128]{1,0:T(1,128)}', space=vmem, size = 0x12000, scoped, tag = 'internal scratch']
  %s0 = inlined_call_operand.vmem [shape: bf16[256,256], index: 0, kind: input, shape index: {}]
  %s1 = inlined_call_operand.vmem [shape: bf16[256,128], index: 1, kind: input, shape index: {}]
  %s2 = inlined_call_operand.vmem [shape: f32[1,128], index: 2, kind: input, shape index: {}]
  %s3 = inlined_call_operand.vmem [shape: bf16[128,128], index: 3, kind: input, shape index: {}]
  %s4 = inlined_call_operand.vmem [shape: f32[1,128], index: 4, kind: input, shape index: {}]
  %s5 = inlined_call_operand.vmem [shape: f32[256,128], index: 5, kind: output, shape index: {}]
  %s6 = sld [smem:[#allocation0]]
  $region30: #{encoder_forward.1} parent=0
    _
  %s8 = ssub.s32 1, %s6
  %s9 = scalar_select 0, %s8, %s6
  // Predicated region
  $region2: #{encoder_forward.1} parent=0 // pred_check
    _
  $region3: #{encoder_forward.1} parent=0 // pred_check_branch
    %11 = sbr.rel (0) target = $region5
  $region4: #{encoder_forward.1} parent=0 // pred_region
    _
  $region5: #{encoder_forward.1} parent=0 // pred_fallthru
    _
  // Predicated region
  $region6: #{encoder_forward.1} parent=0 // pred_check
    _
  $region7: #{encoder_forward.1} parent=0 // pred_check_branch
    %13 = sbr.rel (0) target = $region9
  $region8: #{encoder_forward.1} parent=0 // pred_region
    _
  $region9: #{encoder_forward.1} parent=0 // pred_fallthru
    _
  // Predicated region
  $region10: #{encoder_forward.1} parent=0 // pred_check
    _
  $region11: #{encoder_forward.1} parent=0 // pred_check_branch
    %15 = sbr.rel (0) target = $region13
  $region12: #{encoder_forward.1} parent=0 // pred_region
    _
  $region13: #{encoder_forward.1} parent=0 // pred_fallthru
    _
  // Predicated region
  $region14: #{encoder_forward.1} parent=0 // pred_check
    _
  $region15: #{encoder_forward.1} parent=0 // pred_check_branch
    %17 = sbr.rel (0) target = $region17
  $region16: #{encoder_forward.1} parent=0 // pred_region
    _
  $region17: #{encoder_forward.1} parent=0 // pred_fallthru
    _
  // Predicated region
  $region18: #{encoder_forward.1} parent=0 // pred_check
    _
  $region19: #{encoder_forward.1} parent=0 // pred_check_branch
    %19 = sbr.rel (0) target = $region21
  $region20: #{encoder_forward.1} parent=0 // pred_region
    _
  $region21: #{encoder_forward.1} parent=0 // pred_fallthru
    _
  %v21 = vld [vmem:[%s0] sm:$0xff]
  %v22 = vld [vmem:[%s0 + $0x8] sm:$0xff]
  %v23 = vld [vmem:[%s0 + $0x10] sm:$0xff]
  %v24 = vld [vmem:[%s0 + $0x18] sm:$0xff]
  %v25 = vld [vmem:[%s0 + $0x20] sm:$0xff]
  %v26 = vld [vmem:[%s0 + $0x28] sm:$0xff]
  %v27 = vld [vmem:[%s0 + $0x30] sm:$0xff]
  %v28 = vld [vmem:[%s0 + $0x38] sm:$0xff]
  %v29 = vld [vmem:[%s0 + $0x40] sm:$0xff]
  %v30 = vld [vmem:[%s0 + $0x48] sm:$0xff]
  %v31 = vld [vmem:[%s0 + $0x50] sm:$0xff]
  %v32 = vld [vmem:[%s0 + $0x58] sm:$0xff]
  %v33 = vld [vmem:[%s0 + $0x60] sm:$0xff]
  %v34 = vld [vmem:[%s0 + $0x68] sm:$0xff]
  %v35 = vld [vmem:[%s0 + $0x70] sm:$0xff]
  %v36 = vld [vmem:[%s0 + $0x78] sm:$0xff]
  %v37 = vld [vmem:[%s0 + $0x80] sm:$0xff]
  %v38 = vld [vmem:[%s0 + $0x88] sm:$0xff]
  %v39 = vld [vmem:[%s0 + $0x90] sm:$0xff]
  %v40 = vld [vmem:[%s0 + $0x98] sm:$0xff]
  %v41 = vld [vmem:[%s0 + $0xa0] sm:$0xff]
  %v42 = vld [vmem:[%s0 + $0xa8] sm:$0xff]
  %v43 = vld [vmem:[%s0 + $0xb0] sm:$0xff]
  %v44 = vld [vmem:[%s0 + $0xb8] sm:$0xff]
  %v45 = vld [vmem:[%s0 + $0xc0] sm:$0xff]
  %v46 = vld [vmem:[%s0 + $0xc8] sm:$0xff]
  %v47 = vld [vmem:[%s0 + $0xd0] sm:$0xff]
  %v48 = vld [vmem:[%s0 + $0xd8] sm:$0xff]
  %v49 = vld [vmem:[%s0 + $0xe0] sm:$0xff]
  %v50 = vld [vmem:[%s0 + $0xe8] sm:$0xff]
  %v51 = vld [vmem:[%s0 + $0xf0] sm:$0xff]
  %v52 = vld [vmem:[%s0 + $0xf8] sm:$0xff]
  %v53 = vld [vmem:[%s1] sm:$0xf]
  %v54 = vld [vmem:[%s1 + $0x4] sm:$0xf]
  %v55 = vld [vmem:[%s1 + $0x8] sm:$0xf]
  %v56 = vld [vmem:[%s1 + $0xc] sm:$0xf]
  %v57 = vld [vmem:[%s1 + $0x10] sm:$0xf]
  %v58 = vld [vmem:[%s1 + $0x14] sm:$0xf]
  %v59 = vld [vmem:[%s1 + $0x18] sm:$0xf]
  %v60 = vld [vmem:[%s1 + $0x1c] sm:$0xf]
  %v61 = vld [vmem:[%s1 + $0x20] sm:$0xf]
  %v62 = vld [vmem:[%s1 + $0x24] sm:$0xf]
  %v63 = vld [vmem:[%s1 + $0x28] sm:$0xf]
  %v64 = vld [vmem:[%s1 + $0x2c] sm:$0xf]
  %v65 = vld [vmem:[%s1 + $0x30] sm:$0xf]
  %v66 = vld [vmem:[%s1 + $0x34] sm:$0xf]
  %v67 = vld [vmem:[%s1 + $0x38] sm:$0xf]
  %v68 = vld [vmem:[%s1 + $0x3c] sm:$0xf]
  %v69 = vld [vmem:[%s1 + $0x40] sm:$0xf]
  %v70 = vld [vmem:[%s1 + $0x44] sm:$0xf]
  %v71 = vld [vmem:[%s1 + $0x48] sm:$0xf]
  %v72 = vld [vmem:[%s1 + $0x4c] sm:$0xf]
  %v73 = vld [vmem:[%s1 + $0x50] sm:$0xf]
  %v74 = vld [vmem:[%s1 + $0x54] sm:$0xf]
  %v75 = vld [vmem:[%s1 + $0x58] sm:$0xf]
  %v76 = vld [vmem:[%s1 + $0x5c] sm:$0xf]
  %v77 = vld [vmem:[%s1 + $0x60] sm:$0xf]
  %v78 = vld [vmem:[%s1 + $0x64] sm:$0xf]
  %v79 = vld [vmem:[%s1 + $0x68] sm:$0xf]
  %v80 = vld [vmem:[%s1 + $0x6c] sm:$0xf]
  %v81 = vld [vmem:[%s1 + $0x70] sm:$0xf]
  %v82 = vld [vmem:[%s1 + $0x74] sm:$0xf]
  %v83 = vld [vmem:[%s1 + $0x78] sm:$0xf]
  %v84 = vld [vmem:[%s1 + $0x7c] sm:$0xf]
  %v85 = vld [vmem:[%s2] sm:$0x1]
  %v87 = vlaneseq
  %v88 = vshrl.u32 %v87, 7
  %v89 = vsub.s32 0, %v88
  %v90 = vrot.slane %v85, %v89
  %v124 = vunpack.c.l.b16 %v21
  %v125 = vunpack.c.h.b16 %v21
  %v126 = vunpack.c.l.b16 %v22
  %v127 = vunpack.c.h.b16 %v22
  %v128 = vunpack.c.l.b16 %v23
  %v129 = vunpack.c.h.b16 %v23
  %v130 = vunpack.c.l.b16 %v24
  %v131 = vunpack.c.h.b16 %v24
  %v132 = vunpack.c.l.b16 %v25
  %v133 = vunpack.c.h.b16 %v25
  %v134 = vunpack.c.l.b16 %v26
  %v135 = vunpack.c.h.b16 %v26
  %v136 = vunpack.c.l.b16 %v27
  %v137 = vunpack.c.h.b16 %v27
  %v138 = vunpack.c.l.b16 %v28
  %v139 = vunpack.c.h.b16 %v28
  %v140 = vunpack.c.l.b16 %v29
  %v141 = vunpack.c.h.b16 %v29
  %v142 = vunpack.c.l.b16 %v30
  %v143 = vunpack.c.h.b16 %v30
  %v144 = vunpack.c.l.b16 %v31
  %v145 = vunpack.c.h.b16 %v31
  %v146 = vunpack.c.l.b16 %v32
  %v147 = vunpack.c.h.b16 %v32
  %v148 = vunpack.c.l.b16 %v33
  %v149 = vunpack.c.h.b16 %v33
  %v150 = vunpack.c.l.b16 %v34
  %v151 = vunpack.c.h.b16 %v34
  %v152 = vunpack.c.l.b16 %v35
  %v153 = vunpack.c.h.b16 %v35
  %v154 = vunpack.c.l.b16 %v36
  %v155 = vunpack.c.h.b16 %v36
  %v156 = vunpack.c.l.b16 %v37
  %v157 = vunpack.c.h.b16 %v37
  %v158 = vunpack.c.l.b16 %v38
  %v159 = vunpack.c.h.b16 %v38
  %v160 = vunpack.c.l.b16 %v39
  %v161 = vunpack.c.h.b16 %v39
  %v162 = vunpack.c.l.b16 %v40
  %v163 = vunpack.c.h.b16 %v40
  %v164 = vunpack.c.l.b16 %v41
  %v165 = vunpack.c.h.b16 %v41
  %v166 = vunpack.c.l.b16 %v42
  %v167 = vunpack.c.h.b16 %v42
  %v168 = vunpack.c.l.b16 %v43
  %v169 = vunpack.c.h.b16 %v43
  %v170 = vunpack.c.l.b16 %v44
  %v171 = vunpack.c.h.b16 %v44
  %v172 = vunpack.c.l.b16 %v45
  %v173 = vunpack.c.h.b16 %v45
  %v174 = vunpack.c.l.b16 %v46
  %v175 = vunpack.c.h.b16 %v46
  %v176 = vunpack.c.l.b16 %v47
  %v177 = vunpack.c.h.b16 %v47
  %v178 = vunpack.c.l.b16 %v48
  %v179 = vunpack.c.h.b16 %v48
  %v180 = vunpack.c.l.b16 %v49
  %v181 = vunpack.c.h.b16 %v49
  %v182 = vunpack.c.l.b16 %v50
  %v183 = vunpack.c.h.b16 %v50
  %v184 = vunpack.c.l.b16 %v51
  %v185 = vunpack.c.h.b16 %v51
  %v186 = vunpack.c.l.b16 %v52
  %v187 = vunpack.c.h.b16 %v52
  %v188 = vpack.c.b16 %v126, %v124
  %v189 = vpack.c.b16 %v127, %v125
  %v190 = vpack.c.b16 %v130, %v128
  %v191 = vpack.c.b16 %v131, %v129
  %v192 = vpack.c.b16 %v134, %v132
  %v193 = vpack.c.b16 %v135, %v133
  %v194 = vpack.c.b16 %v138, %v136
  %v195 = vpack.c.b16 %v139, %v137
  %v196 = vpack.c.b16 %v142, %v140
  %v197 = vpack.c.b16 %v143, %v141
  %v198 = vpack.c.b16 %v146, %v144
  %v199 = vpack.c.b16 %v147, %v145
  %v200 = vpack.c.b16 %v150, %v148
  %v201 = vpack.c.b16 %v151, %v149
  %v202 = vpack.c.b16 %v154, %v152
  %v203 = vpack.c.b16 %v155, %v153
  %v204 = vpack.c.b16 %v158, %v156
  %v205 = vpack.c.b16 %v159, %v157
  %v206 = vpack.c.b16 %v162, %v160
  %v207 = vpack.c.b16 %v163, %v161
  %v208 = vpack.c.b16 %v166, %v164
  %v209 = vpack.c.b16 %v167, %v165
  %v210 = vpack.c.b16 %v170, %v168
  %v211 = vpack.c.b16 %v171, %v169
  %v212 = vpack.c.b16 %v174, %v172
  %v213 = vpack.c.b16 %v175, %v173
  %v214 = vpack.c.b16 %v178, %v176
  %v215 = vpack.c.b16 %v179, %v177
  %v216 = vpack.c.b16 %v182, %v180
  %v217 = vpack.c.b16 %v183, %v181
  %v218 = vpack.c.b16 %v186, %v184
  %v219 = vpack.c.b16 %v187, %v185
  %v284 = vunpack.c.l.b16 %v53
  %v285 = vunpack.c.l.b16 %v54
  %v286 = vunpack.c.l.b16 %v55
  %v287 = vunpack.c.l.b16 %v56
  %v288 = vunpack.c.l.b16 %v57
  %v289 = vunpack.c.l.b16 %v58
  %v290 = vunpack.c.l.b16 %v59
  %v291 = vunpack.c.l.b16 %v60
  %v292 = vunpack.c.l.b16 %v61
  %v293 = vunpack.c.l.b16 %v62
  %v294 = vunpack.c.l.b16 %v63
  %v295 = vunpack.c.l.b16 %v64
  %v296 = vunpack.c.l.b16 %v65
  %v297 = vunpack.c.l.b16 %v66
  %v298 = vunpack.c.l.b16 %v67
  %v299 = vunpack.c.l.b16 %v68
  %v300 = vunpack.c.l.b16 %v69
  %v301 = vunpack.c.l.b16 %v70
  %v302 = vunpack.c.l.b16 %v71
  %v303 = vunpack.c.l.b16 %v72
  %v304 = vunpack.c.l.b16 %v73
  %v305 = vunpack.c.l.b16 %v74
  %v306 = vunpack.c.l.b16 %v75
  %v307 = vunpack.c.l.b16 %v76
  %v308 = vunpack.c.l.b16 %v77
  %v309 = vunpack.c.l.b16 %v78
  %v310 = vunpack.c.l.b16 %v79
  %v311 = vunpack.c.l.b16 %v80
  %v312 = vunpack.c.l.b16 %v81
  %v313 = vunpack.c.l.b16 %v82
  %v314 = vunpack.c.l.b16 %v83
  %v315 = vunpack.c.l.b16 %v84
  %v316 = vpack.c.b16 %v285, %v284
  %v317 = vpack.c.b16 %v287, %v286
  %v318 = vpack.c.b16 %v289, %v288
  %v319 = vpack.c.b16 %v291, %v290
  %v320 = vpack.c.b16 %v293, %v292
  %v321 = vpack.c.b16 %v295, %v294
  %v322 = vpack.c.b16 %v297, %v296
  %v323 = vpack.c.b16 %v299, %v298
  %v324 = vpack.c.b16 %v301, %v300
  %v325 = vpack.c.b16 %v303, %v302
  %v326 = vpack.c.b16 %v305, %v304
  %v327 = vpack.c.b16 %v307, %v306
  %v328 = vpack.c.b16 %v309, %v308
  %v329 = vpack.c.b16 %v311, %v310
  %v330 = vpack.c.b16 %v313, %v312
  %v331 = vpack.c.b16 %v315, %v314
  %348 = vmatprep.subr.bf16.mxu0 0
  %349 = vmatpush1.bf16.msra.mxu0 %v316
  %350 = vmatprep.subr.bf16.mxu0 0
  %351 = vmatpush1.bf16.msra.mxu0 %v317
  %352 = vmatprep.subr.bf16.mxu0 0
  %353 = vmatpush1.bf16.msra.mxu0 %v318
  %354 = vmatprep.subr.bf16.mxu0 0
  %355 = vmatpush1.bf16.msra.mxu0 %v319
  %356 = vmatprep.subr.bf16.mxu0 0
  %357 = vmatpush1.bf16.msra.mxu0 %v320
  %358 = vmatprep.subr.bf16.mxu0 0
  %359 = vmatpush1.bf16.msra.mxu0 %v321
  %360 = vmatprep.subr.bf16.mxu0 0
  %361 = vmatpush1.bf16.msra.mxu0 %v322
  %362 = vmatprep.subr.bf16.mxu0 0
  %363 = vmatpush1.bf16.msra.mxu0 %v323
  %364 = vmatprep.subr.bf16.mxu0 0
  %365 = vmatpush1.bf16.msra.mxu0 %v324
  %366 = vmatprep.subr.bf16.mxu0 0
  %367 = vmatpush1.bf16.msra.mxu0 %v325
  %368 = vmatprep.subr.bf16.mxu0 0
  %369 = vmatpush1.bf16.msra.mxu0 %v326
  %370 = vmatprep.subr.bf16.mxu0 0
  %371 = vmatpush1.bf16.msra.mxu0 %v327
  %372 = vmatprep.subr.bf16.mxu0 0
  %373 = vmatpush1.bf16.msra.mxu0 %v328
  %374 = vmatprep.subr.bf16.mxu0 0
  %375 = vmatpush1.bf16.msra.mxu0 %v329
  %376 = vmatprep.subr.bf16.mxu0 0
  %377 = vmatpush1.bf16.msra.mxu0 %v330
  %378 = vmatprep.subr.bf16.mxu0 0
  %379 = vmatpush1.bf16.msra.mxu0 %v331
  %380 = vmatprep.mubr.bf16.mxu0 %v189
  %381 = vmatmul.mubr.bf16.gmra.mrb[0].mxu0 %v188
  %v382 = vpop.f32.mrb[0].mxu0
  %v383 = vadd.f32 %v90, %v382
  %v384 = vpop.f32.mrb[0].mxu0
  %v385 = vpop.f32.mrb[0].mxu0
  %v386 = vadd.f32 %v90, %v385
  %v387 = vpop.f32.mrb[0].mxu0
  %388 = vmatprep.mubr.bf16.mxu0 %v191
  %389 = vmatmul.mubr.bf16.gmra.mrb[0].mxu0 %v190
  %v390 = vpop.f32.mrb[0].mxu0
  %v391 = vadd.f32 %v90, %v390
  %v392 = vpop.f32.mrb[0].mxu0
  %v393 = vpop.f32.mrb[0].mxu0
  %v394 = vadd.f32 %v90, %v393
  %v395 = vpop.f32.mrb[0].mxu0
  %396 = vmatprep.mubr.bf16.mxu0 %v193
  %397 = vmatmul.mubr.bf16.gmra.mrb[0].mxu0 %v192
  %v398 = vpop.f32.mrb[0].mxu0
  %v399 = vadd.f32 %v90, %v398
  %v400 = vpop.f32.mrb[0].mxu0
  %v401 = vpop.f32.mrb[0].mxu0
  %v402 = vadd.f32 %v90, %v401
  %v403 = vpop.f32.mrb[0].mxu0
  %404 = vmatprep.mubr.bf16.mxu0 %v195
  %405 = vmatmul.mubr.bf16.gmra.mrb[0].mxu0 %v194
  %v406 = vpop.f32.mrb[0].mxu0
  %v407 = vadd.f32 %v90, %v406
  %v408 = vpop.f32.mrb[0].mxu0
  %v409 = vpop.f32.mrb[0].mxu0
  %v410 = vadd.f32 %v90, %v409
  %v411 = vpop.f32.mrb[0].mxu0
  %412 = vmatprep.mubr.bf16.mxu0 %v197
  %413 = vmatmul.mubr.bf16.gmra.mrb[0].mxu0 %v196
  %v414 = vpop.f32.mrb[0].mxu0
  %v415 = vadd.f32 %v90, %v414
  %v416 = vpop.f32.mrb[0].mxu0
  %v417 = vpop.f32.mrb[0].mxu0
  %v418 = vadd.f32 %v90, %v417
  %v419 = vpop.f32.mrb[0].mxu0
  %420 = vmatprep.mubr.bf16.mxu0 %v199
  %421 = vmatmul.mubr.bf16.gmra.mrb[0].mxu0 %v198
  %v422 = vpop.f32.mrb[0].mxu0
  %v423 = vadd.f32 %v90, %v422
  %v424 = vpop.f32.mrb[0].mxu0
  %v425 = vpop.f32.mrb[0].mxu0
  %v426 = vadd.f32 %v90, %v425
  %v427 = vpop.f32.mrb[0].mxu0
  %428 = vmatprep.mubr.bf16.mxu0 %v201
  %429 = vmatmul.mubr.bf16.gmra.mrb[0].mxu0 %v200
  %v430 = vpop.f32.mrb[0].mxu0
  %v431 = vadd.f32 %v90, %v430
  %v432 = vpop.f32.mrb[0].mxu0
  %v433 = vpop.f32.mrb[0].mxu0
  %v434 = vadd.f32 %v90, %v433
  %v435 = vpop.f32.mrb[0].mxu0
  %436 = vmatprep.mubr.bf16.mxu0 %v203
  %437 = vmatmul.mubr.bf16.gmra.mrb[0].mxu0 %v202
  %v438 = vpop.f32.mrb[0].mxu0
  %v439 = vadd.f32 %v90, %v438
  %v440 = vpop.f32.mrb[0].mxu0
  %v441 = vpop.f32.mrb[0].mxu0
  %v442 = vadd.f32 %v90, %v441
  %v443 = vpop.f32.mrb[0].mxu0
  %444 = vmatprep.mubr.bf16.mxu0 %v205
  %445 = vmatmul.mubr.bf16.gmra.mrb[0].mxu0 %v204
  %v446 = vpop.f32.mrb[0].mxu0
  %v447 = vadd.f32 %v90, %v446
  %v448 = vpop.f32.mrb[0].mxu0
  %v449 = vpop.f32.mrb[0].mxu0
  %v450 = vadd.f32 %v90, %v449
  %v451 = vpop.f32.mrb[0].mxu0
  %452 = vmatprep.mubr.bf16.mxu0 %v207
  %453 = vmatmul.mubr.bf16.gmra.mrb[0].mxu0 %v206
  %v454 = vpop.f32.mrb[0].mxu0
  %v455 = vadd.f32 %v90, %v454
  %v456 = vpop.f32.mrb[0].mxu0
  %v457 = vpop.f32.mrb[0].mxu0
  %v458 = vadd.f32 %v90, %v457
  %v459 = vpop.f32.mrb[0].mxu0
  %460 = vmatprep.mubr.bf16.mxu0 %v209
  %461 = vmatmul.mubr.bf16.gmra.mrb[0].mxu0 %v208
  %v462 = vpop.f32.mrb[0].mxu0
  %v463 = vadd.f32 %v90, %v462
  %v464 = vpop.f32.mrb[0].mxu0
  %v465 = vpop.f32.mrb[0].mxu0
  %v466 = vadd.f32 %v90, %v465
  %v467 = vpop.f32.mrb[0].mxu0
  %468 = vmatprep.mubr.bf16.mxu0 %v211
  %469 = vmatmul.mubr.bf16.gmra.mrb[0].mxu0 %v210
  %v470 = vpop.f32.mrb[0].mxu0
  %v471 = vadd.f32 %v90, %v470
  %v472 = vpop.f32.mrb[0].mxu0
  %v473 = vpop.f32.mrb[0].mxu0
  %v474 = vadd.f32 %v90, %v473
  %v475 = vpop.f32.mrb[0].mxu0
  %476 = vmatprep.mubr.bf16.mxu0 %v213
  %477 = vmatmul.mubr.bf16.gmra.mrb[0].mxu0 %v212
  %v478 = vpop.f32.mrb[0].mxu0
  %v479 = vadd.f32 %v90, %v478
  %v480 = vpop.f32.mrb[0].mxu0
  %v481 = vpop.f32.mrb[0].mxu0
  %v482 = vadd.f32 %v90, %v481
  %v483 = vpop.f32.mrb[0].mxu0
  %484 = vmatprep.mubr.bf16.mxu0 %v215
  %485 = vmatmul.mubr.bf16.gmra.mrb[0].mxu0 %v214
  %v486 = vpop.f32.mrb[0].mxu0
  %v487 = vadd.f32 %v90, %v486
  %v488 = vpop.f32.mrb[0].mxu0
  %v489 = vpop.f32.mrb[0].mxu0
  %v490 = vadd.f32 %v90, %v489
  %v491 = vpop.f32.mrb[0].mxu0
  %492 = vmatprep.mubr.bf16.mxu0 %v217
  %493 = vmatmul.mubr.bf16.gmra.mrb[0].mxu0 %v216
  %v494 = vpop.f32.mrb[0].mxu0
  %v495 = vadd.f32 %v90, %v494
  %v496 = vpop.f32.mrb[0].mxu0
  %v497 = vpop.f32.mrb[0].mxu0
  %v498 = vadd.f32 %v90, %v497
  %v499 = vpop.f32.mrb[0].mxu0
  %500 = vmatprep.mubr.bf16.mxu0 %v219
  %501 = vmatmul.mubr.bf16.gmra.mrb[0].mxu0 %v218
  %v502 = vpop.f32.mrb[0].mxu0
  %v503 = vadd.f32 %v90, %v502
  %v504 = vpop.f32.mrb[0].mxu0
  %v505 = vpop.f32.mrb[0].mxu0
  %v506 = vadd.f32 %v90, %v505
  %v507 = vpop.f32.mrb[0].mxu0
  %508 = vdwg.mxu0
  %v509 = vmax.f32 %v383, 0.0
  %v510 = vmax.f32 %v386, 0.0
  %v511 = vmax.f32 %v391, 0.0
  %v512 = vmax.f32 %v394, 0.0
  %v513 = vmax.f32 %v399, 0.0
  %v514 = vmax.f32 %v402, 0.0
  %v515 = vmax.f32 %v407, 0.0
  %v516 = vmax.f32 %v410, 0.0
  %v517 = vmax.f32 %v415, 0.0
  %v518 = vmax.f32 %v418, 0.0
  %v519 = vmax.f32 %v423, 0.0
  %v520 = vmax.f32 %v426, 0.0
  %v521 = vmax.f32 %v431, 0.0
  %v522 = vmax.f32 %v434, 0.0
  %v523 = vmax.f32 %v439, 0.0
  %v524 = vmax.f32 %v442, 0.0
  %v525 = vmax.f32 %v447, 0.0
  %v526 = vmax.f32 %v450, 0.0
  %v527 = vmax.f32 %v455, 0.0
  %v528 = vmax.f32 %v458, 0.0
  %v529 = vmax.f32 %v463, 0.0
  %v530 = vmax.f32 %v466, 0.0
  %v531 = vmax.f32 %v471, 0.0
  %v532 = vmax.f32 %v474, 0.0
  %v533 = vmax.f32 %v479, 0.0
  %v534 = vmax.f32 %v482, 0.0
  %v535 = vmax.f32 %v487, 0.0
  %v536 = vmax.f32 %v490, 0.0
  %v537 = vmax.f32 %v495, 0.0
  %v538 = vmax.f32 %v498, 0.0
  %v539 = vmax.f32 %v503, 0.0
  %v540 = vmax.f32 %v506, 0.0
  %v541 = vpack.c.bf16 %v510, %v509
  %v542 = vpack.c.bf16 %v512, %v511
  %v543 = vpack.c.bf16 %v514, %v513
  %v544 = vpack.c.bf16 %v516, %v515
  %v545 = vpack.c.bf16 %v518, %v517
  %v546 = vpack.c.bf16 %v520, %v519
  %v547 = vpack.c.bf16 %v522, %v521
  %v548 = vpack.c.bf16 %v524, %v523
  %v549 = vpack.c.bf16 %v526, %v525
  %v550 = vpack.c.bf16 %v528, %v527
  %v551 = vpack.c.bf16 %v530, %v529
  %v552 = vpack.c.bf16 %v532, %v531
  %v553 = vpack.c.bf16 %v534, %v533
  %v554 = vpack.c.bf16 %v536, %v535
  %v555 = vpack.c.bf16 %v538, %v537
  %v556 = vpack.c.bf16 %v540, %v539
  %v557 = vld [vmem:[%s3] sm:$0xf]
  %v558 = vld [vmem:[%s3 + $0x4] sm:$0xf]
  %v559 = vld [vmem:[%s3 + $0x8] sm:$0xf]
  %v560 = vld [vmem:[%s3 + $0xc] sm:$0xf]
  %v561 = vld [vmem:[%s3 + $0x10] sm:$0xf]
  %v562 = vld [vmem:[%s3 + $0x14] sm:$0xf]
  %v563 = vld [vmem:[%s3 + $0x18] sm:$0xf]
  %v564 = vld [vmem:[%s3 + $0x1c] sm:$0xf]
  %v565 = vld [vmem:[%s3 + $0x20] sm:$0xf]
  %v566 = vld [vmem:[%s3 + $0x24] sm:$0xf]
  %v567 = vld [vmem:[%s3 + $0x28] sm:$0xf]
  %v568 = vld [vmem:[%s3 + $0x2c] sm:$0xf]
  %v569 = vld [vmem:[%s3 + $0x30] sm:$0xf]
  %v570 = vld [vmem:[%s3 + $0x34] sm:$0xf]
  %v571 = vld [vmem:[%s3 + $0x38] sm:$0xf]
  %v572 = vld [vmem:[%s3 + $0x3c] sm:$0xf]
  %v589 = vunpack.c.l.b16 %v557
  %v590 = vunpack.c.l.b16 %v558
  %v591 = vunpack.c.l.b16 %v559
  %v592 = vunpack.c.l.b16 %v560
  %v593 = vunpack.c.l.b16 %v561
  %v594 = vunpack.c.l.b16 %v562
  %v595 = vunpack.c.l.b16 %v563
  %v596 = vunpack.c.l.b16 %v564
  %v597 = vunpack.c.l.b16 %v565
  %v598 = vunpack.c.l.b16 %v566
  %v599 = vunpack.c.l.b16 %v567
  %v600 = vunpack.c.l.b16 %v568
  %v601 = vunpack.c.l.b16 %v569
  %v602 = vunpack.c.l.b16 %v570
  %v603 = vunpack.c.l.b16 %v571
  %v604 = vunpack.c.l.b16 %v572
  %v605 = vpack.c.b16 %v590, %v589
  %v606 = vpack.c.b16 %v592, %v591
  %v607 = vpack.c.b16 %v594, %v593
  %v608 = vpack.c.b16 %v596, %v595
  %v609 = vpack.c.b16 %v598, %v597
  %v610 = vpack.c.b16 %v600, %v599
  %v611 = vpack.c.b16 %v602, %v601
  %v612 = vpack.c.b16 %v604, %v603
  %621 = vmatprep.subr.bf16.mxu0 0
  %622 = vmatpush1.bf16.msra.mxu0 %v605
  %623 = vmatprep.subr.bf16.mxu0 0
  %624 = vmatpush1.bf16.msra.mxu0 %v606
  %625 = vmatprep.subr.bf16.mxu0 0
  %626 = vmatpush1.bf16.msra.mxu0 %v607
  %627 = vmatprep.subr.bf16.mxu0 0
  %628 = vmatpush1.bf16.msra.mxu0 %v608
  %629 = vmatprep.subr.bf16.mxu0 0
  %630 = vmatpush1.bf16.msra.mxu0 %v609
  %631 = vmatprep.subr.bf16.mxu0 0
  %632 = vmatpush1.bf16.msra.mxu0 %v610
  %633 = vmatprep.subr.bf16.mxu0 0
  %634 = vmatpush1.bf16.msra.mxu0 %v611
  %635 = vmatprep.subr.bf16.mxu0 0
  %636 = vmatpush1.bf16.msra.mxu0 %v612
  %637 = vmatprep.subr.bf16.mxu0 0
  %638 = vmatpush1.bf16.msra.mxu0 0
  %639 = vmatprep.subr.bf16.mxu0 0
  %640 = vmatpush1.bf16.msra.mxu0 0
  %641 = vmatprep.subr.bf16.mxu0 0
  %642 = vmatpush1.bf16.msra.mxu0 0
  %643 = vmatprep.subr.bf16.mxu0 0
  %644 = vmatpush1.bf16.msra.mxu0 0
  %645 = vmatprep.subr.bf16.mxu0 0
  %646 = vmatpush1.bf16.msra.mxu0 0
  %647 = vmatprep.subr.bf16.mxu0 0
  %648 = vmatpush1.bf16.msra.mxu0 0
  %649 = vmatprep.subr.bf16.mxu0 0
  %650 = vmatpush1.bf16.msra.mxu0 0
  %651 = vmatprep.subr.bf16.mxu0 0
  %652 = vmatpush1.bf16.msra.mxu0 0
  %653 = vmatprep.mubr.bf16.mxu0 0
  %654 = vmatmul.mubr.bf16.gmra.mrb[0].mxu0 %v541
  %v655 = vpop.f32.mrb[0].mxu0
  %v656 = vadd.f32 0.0, %v655
  %v657 = vpop.f32.mrb[0].mxu0
  %v658 = vpop.f32.mrb[0].mxu0
  %v659 = vadd.f32 0.0, %v658
  %v660 = vpop.f32.mrb[0].mxu0
  %661 = vmatprep.mubr.bf16.mxu0 0
  %662 = vmatmul.mubr.bf16.gmra.mrb[0].mxu0 %v542
  %v663 = vpop.f32.mrb[0].mxu0
  %v664 = vadd.f32 0.0, %v663
  %v665 = vpop.f32.mrb[0].mxu0
  %v666 = vpop.f32.mrb[0].mxu0
  %v667 = vadd.f32 0.0, %v666
  %v668 = vpop.f32.mrb[0].mxu0
  %669 = vmatprep.mubr.bf16.mxu0 0
  %670 = vmatmul.mubr.bf16.gmra.mrb[0].mxu0 %v543
  %v671 = vpop.f32.mrb[0].mxu0
  %v672 = vadd.f32 0.0, %v671
  %v673 = vpop.f32.mrb[0].mxu0
  %v674 = vpop.f32.mrb[0].mxu0
  %v675 = vadd.f32 0.0, %v674
  %v676 = vpop.f32.mrb[0].mxu0
  %677 = vmatprep.mubr.bf16.mxu0 0
  %678 = vmatmul.mubr.bf16.gmra.mrb[0].mxu0 %v544
  %v679 = vpop.f32.mrb[0].mxu0
  %v680 = vadd.f32 0.0, %v679
  %v681 = vpop.f32.mrb[0].mxu0
  %v682 = vpop.f32.mrb[0].mxu0
  %v683 = vadd.f32 0.0, %v682
  %v684 = vpop.f32.mrb[0].mxu0
  %685 = vmatprep.mubr.bf16.mxu0 0
  %686 = vmatmul.mubr.bf16.gmra.mrb[0].mxu0 %v545
  %v687 = vpop.f32.mrb[0].mxu0
  %v688 = vadd.f32 0.0, %v687
  %v689 = vpop.f32.mrb[0].mxu0
  %v690 = vpop.f32.mrb[0].mxu0
  %v691 = vadd.f32 0.0, %v690
  %v692 = vpop.f32.mrb[0].mxu0
  %693 = vmatprep.mubr.bf16.mxu0 0
  %694 = vmatmul.mubr.bf16.gmra.mrb[0].mxu0 %v546
  %v695 = vpop.f32.mrb[0].mxu0
  %v696 = vadd.f32 0.0, %v695
  %v697 = vpop.f32.mrb[0].mxu0
  %v698 = vpop.f32.mrb[0].mxu0
  %v699 = vadd.f32 0.0, %v698
  %v700 = vpop.f32.mrb[0].mxu0
  %701 = vmatprep.mubr.bf16.mxu0 0
  %702 = vmatmul.mubr.bf16.gmra.mrb[0].mxu0 %v547
  %v703 = vpop.f32.mrb[0].mxu0
  %v704 = vadd.f32 0.0, %v703
  %v705 = vpop.f32.mrb[0].mxu0
  %v706 = vpop.f32.mrb[0].mxu0
  %v707 = vadd.f32 0.0, %v706
  %v708 = vpop.f32.mrb[0].mxu0
  %709 = vmatprep.mubr.bf16.mxu0 0
  %710 = vmatmul.mubr.bf16.gmra.mrb[0].mxu0 %v548
  %v711 = vpop.f32.mrb[0].mxu0
  %v712 = vadd.f32 0.0, %v711
  %v713 = vpop.f32.mrb[0].mxu0
  %v714 = vpop.f32.mrb[0].mxu0
  %v715 = vadd.f32 0.0, %v714
  %v716 = vpop.f32.mrb[0].mxu0
  %717 = vmatprep.mubr.bf16.mxu0 0
  %718 = vmatmul.mubr.bf16.gmra.mrb[0].mxu0 %v549
  %v719 = vpop.f32.mrb[0].mxu0
  %v720 = vadd.f32 0.0, %v719
  %v721 = vpop.f32.mrb[0].mxu0
  %v722 = vpop.f32.mrb[0].mxu0
  %v723 = vadd.f32 0.0, %v722
  %v724 = vpop.f32.mrb[0].mxu0
  %725 = vmatprep.mubr.bf16.mxu0 0
  %726 = vmatmul.mubr.bf16.gmra.mrb[0].mxu0 %v550
  %v727 = vpop.f32.mrb[0].mxu0
  %v728 = vadd.f32 0.0, %v727
  %v729 = vpop.f32.mrb[0].mxu0
  %v730 = vpop.f32.mrb[0].mxu0
  %v731 = vadd.f32 0.0, %v730
  %v732 = vpop.f32.mrb[0].mxu0
  %733 = vmatprep.mubr.bf16.mxu0 0
  %734 = vmatmul.mubr.bf16.gmra.mrb[0].mxu0 %v551
  %v735 = vpop.f32.mrb[0].mxu0
  %v736 = vadd.f32 0.0, %v735
  %v737 = vpop.f32.mrb[0].mxu0
  %v738 = vpop.f32.mrb[0].mxu0
  %v739 = vadd.f32 0.0, %v738
  %v740 = vpop.f32.mrb[0].mxu0
  %741 = vmatprep.mubr.bf16.mxu0 0
  %742 = vmatmul.mubr.bf16.gmra.mrb[0].mxu0 %v552
  %v743 = vpop.f32.mrb[0].mxu0
  %v744 = vadd.f32 0.0, %v743
  %v745 = vpop.f32.mrb[0].mxu0
  %v746 = vpop.f32.mrb[0].mxu0
  %v747 = vadd.f32 0.0, %v746
  %v748 = vpop.f32.mrb[0].mxu0
  %749 = vmatprep.mubr.bf16.mxu0 0
  %750 = vmatmul.mubr.bf16.gmra.mrb[0].mxu0 %v553
  %v751 = vpop.f32.mrb[0].mxu0
  %v752 = vadd.f32 0.0, %v751
  %v753 = vpop.f32.mrb[0].mxu0
  %v754 = vpop.f32.mrb[0].mxu0
  %v755 = vadd.f32 0.0, %v754
  %v756 = vpop.f32.mrb[0].mxu0
  %757 = vmatprep.mubr.bf16.mxu0 0
  %758 = vmatmul.mubr.bf16.gmra.mrb[0].mxu0 %v554
  %v759 = vpop.f32.mrb[0].mxu0
  %v760 = vadd.f32 0.0, %v759
  %v761 = vpop.f32.mrb[0].mxu0
  %v762 = vpop.f32.mrb[0].mxu0
  %v763 = vadd.f32 0.0, %v762
  %v764 = vpop.f32.mrb[0].mxu0
  %765 = vmatprep.mubr.bf16.mxu0 0
  %766 = vmatmul.mubr.bf16.gmra.mrb[0].mxu0 %v555
  %v767 = vpop.f32.mrb[0].mxu0
  %v768 = vadd.f32 0.0, %v767
  %v769 = vpop.f32.mrb[0].mxu0
  %v770 = vpop.f32.mrb[0].mxu0
  %v771 = vadd.f32 0.0, %v770
  %v772 = vpop.f32.mrb[0].mxu0
  %773 = vmatprep.mubr.bf16.mxu0 0
  %774 = vmatmul.mubr.bf16.gmra.mrb[0].mxu0 %v556
  %v775 = vpop.f32.mrb[0].mxu0
  %v776 = vadd.f32 0.0, %v775
  %v777 = vpop.f32.mrb[0].mxu0
  %v778 = vpop.f32.mrb[0].mxu0
  %v779 = vadd.f32 0.0, %v778
  %v780 = vpop.f32.mrb[0].mxu0
  %781 = vdwg.mxu0
  %v782 = vpack.c.bf16 %v659, %v656
  %v783 = vpack.c.bf16 %v667, %v664
  %v784 = vpack.c.bf16 %v675, %v672
  %v785 = vpack.c.bf16 %v683, %v680
  %v786 = vpack.c.bf16 %v691, %v688
  %v787 = vpack.c.bf16 %v699, %v696
  %v788 = vpack.c.bf16 %v707, %v704
  %v789 = vpack.c.bf16 %v715, %v712
  %v790 = vpack.c.bf16 %v723, %v720
  %v791 = vpack.c.bf16 %v731, %v728
  %v792 = vpack.c.bf16 %v739, %v736
  %v793 = vpack.c.bf16 %v747, %v744
  %v794 = vpack.c.bf16 %v755, %v752
  %v795 = vpack.c.bf16 %v763, %v760
  %v796 = vpack.c.bf16 %v771, %v768
  %v797 = vpack.c.bf16 %v779, %v776
  %v798 = vld [vmem:[%s4] sm:$0x1]
  %v800 = vlaneseq
  %v801 = vshrl.u32 %v800, 7
  %v802 = vsub.s32 0, %v801
  %v803 = vrot.slane %v798, %v802
  %805 = vmatprep.subr.bf16.mxu0 0
  %806 = vmatpush1.bf16.msra.mxu0 %v782
  %807 = vmatprep.subr.bf16.mxu0 0
  %808 = vmatpush1.bf16.msra.mxu0 %v783
  %809 = vmatprep.subr.bf16.mxu0 0
  %810 = vmatpush1.bf16.msra.mxu0 %v784
  %811 = vmatprep.subr.bf16.mxu0 0
  %812 = vmatpush1.bf16.msra.mxu0 %v785
  %813 = vmatprep.subr.bf16.mxu0 0
  %814 = vmatpush1.bf16.msra.mxu0 %v786
  %815 = vmatprep.subr.bf16.mxu0 0
  %816 = vmatpush1.bf16.msra.mxu0 %v787
  %817 = vmatprep.subr.bf16.mxu0 0
  %818 = vmatpush1.bf16.msra.mxu0 %v788
  %819 = vmatprep.subr.bf16.mxu0 0
  %820 = vmatpush1.bf16.msra.mxu0 %v789
  %821 = vmatprep.subr.bf16.mxu0 0
  %822 = vmatpush1.bf16.msra.mxu0 %v790
  %823 = vmatprep.subr.bf16.mxu0 0
  %824 = vmatpush1.bf16.msra.mxu0 %v791
  %825 = vmatprep.subr.bf16.mxu0 0
  %826 = vmatpush1.bf16.msra.mxu0 %v792
  %827 = vmatprep.subr.bf16.mxu0 0
  %828 = vmatpush1.bf16.msra.mxu0 %v793
  %829 = vmatprep.subr.bf16.mxu0 0
  %830 = vmatpush1.bf16.msra.mxu0 %v794
  %831 = vmatprep.subr.bf16.mxu0 0
  %832 = vmatpush1.bf16.msra.mxu0 %v795
  %833 = vmatprep.subr.bf16.mxu0 0
  %834 = vmatpush1.bf16.msra.mxu0 %v796
  %835 = vmatprep.subr.bf16.mxu0 0
  %836 = vmatpush1.bf16.msra.mxu0 %v797
  %837 = vmatprep.mubr.bf16.mxu0 %v189
  %838 = vmatmul.mubr.bf16.gmra.mrb[0].mxu0 %v188
  %v839 = vpop.f32.mrb[0].mxu0
  %v840 = vadd.f32 %v803, %v839
  %v841 = vpop.f32.mrb[0].mxu0
  %v842 = vpop.f32.mrb[0].mxu0
  %v843 = vadd.f32 %v803, %v842
  %v844 = vpop.f32.mrb[0].mxu0
  %845 = vmatprep.mubr.bf16.mxu0 %v191
  %846 = vmatmul.mubr.bf16.gmra.mrb[0].mxu0 %v190
  %v847 = vpop.f32.mrb[0].mxu0
  %v848 = vadd.f32 %v803, %v847
  %v849 = vpop.f32.mrb[0].mxu0
  %v850 = vpop.f32.mrb[0].mxu0
  %v851 = vadd.f32 %v803, %v850
  %v852 = vpop.f32.mrb[0].mxu0
  %853 = vmatprep.mubr.bf16.mxu0 %v193
  %854 = vmatmul.mubr.bf16.gmra.mrb[0].mxu0 %v192
  %v855 = vpop.f32.mrb[0].mxu0
  %v856 = vadd.f32 %v803, %v855
  %v857 = vpop.f32.mrb[0].mxu0
  %v858 = vpop.f32.mrb[0].mxu0
  %v859 = vadd.f32 %v803, %v858
  %v860 = vpop.f32.mrb[0].mxu0
  %861 = vmatprep.mubr.bf16.mxu0 %v195
  %862 = vmatmul.mubr.bf16.gmra.mrb[0].mxu0 %v194
  %v863 = vpop.f32.mrb[0].mxu0
  %v864 = vadd.f32 %v803, %v863
  %v865 = vpop.f32.mrb[0].mxu0
  %v866 = vpop.f32.mrb[0].mxu0
  %v867 = vadd.f32 %v803, %v866
  %v868 = vpop.f32.mrb[0].mxu0
  %869 = vmatprep.mubr.bf16.mxu0 %v197
  %870 = vmatmul.mubr.bf16.gmra.mrb[0].mxu0 %v196
  %v871 = vpop.f32.mrb[0].mxu0
  %v872 = vadd.f32 %v803, %v871
  %v873 = vpop.f32.mrb[0].mxu0
  %v874 = vpop.f32.mrb[0].mxu0
  %v875 = vadd.f32 %v803, %v874
  %v876 = vpop.f32.mrb[0].mxu0
  %877 = vmatprep.mubr.bf16.mxu0 %v199
  %878 = vmatmul.mubr.bf16.gmra.mrb[0].mxu0 %v198
  %v879 = vpop.f32.mrb[0].mxu0
  %v880 = vadd.f32 %v803, %v879
  %v881 = vpop.f32.mrb[0].mxu0
  %v882 = vpop.f32.mrb[0].mxu0
  %v883 = vadd.f32 %v803, %v882
  %v884 = vpop.f32.mrb[0].mxu0
  %885 = vmatprep.mubr.bf16.mxu0 %v201
  %886 = vmatmul.mubr.bf16.gmra.mrb[0].mxu0 %v200
  %v887 = vpop.f32.mrb[0].mxu0
  %v888 = vadd.f32 %v803, %v887
  %v889 = vpop.f32.mrb[0].mxu0
  %v890 = vpop.f32.mrb[0].mxu0
  %v891 = vadd.f32 %v803, %v890
  %v892 = vpop.f32.mrb[0].mxu0
  %893 = vmatprep.mubr.bf16.mxu0 %v203
  %894 = vmatmul.mubr.bf16.gmra.mrb[0].mxu0 %v202
  %v895 = vpop.f32.mrb[0].mxu0
  %v896 = vadd.f32 %v803, %v895
  %v897 = vpop.f32.mrb[0].mxu0
  %v898 = vpop.f32.mrb[0].mxu0
  %v899 = vadd.f32 %v803, %v898
  %v900 = vpop.f32.mrb[0].mxu0
  %901 = vmatprep.mubr.bf16.mxu0 %v205
  %902 = vmatmul.mubr.bf16.gmra.mrb[0].mxu0 %v204
  %v903 = vpop.f32.mrb[0].mxu0
  %v904 = vadd.f32 %v803, %v903
  %v905 = vpop.f32.mrb[0].mxu0
  %v906 = vpop.f32.mrb[0].mxu0
  %v907 = vadd.f32 %v803, %v906
  %v908 = vpop.f32.mrb[0].mxu0
  %909 = vmatprep.mubr.bf16.mxu0 %v207
  %910 = vmatmul.mubr.bf16.gmra.mrb[0].mxu0 %v206
  %v911 = vpop.f32.mrb[0].mxu0
  %v912 = vadd.f32 %v803, %v911
  %v913 = vpop.f32.mrb[0].mxu0
  %v914 = vpop.f32.mrb[0].mxu0
  %v915 = vadd.f32 %v803, %v914
  %v916 = vpop.f32.mrb[0].mxu0
  %917 = vmatprep.mubr.bf16.mxu0 %v209
  %918 = vmatmul.mubr.bf16.gmra.mrb[0].mxu0 %v208
  %v919 = vpop.f32.mrb[0].mxu0
  %v920 = vadd.f32 %v803, %v919
  %v921 = vpop.f32.mrb[0].mxu0
  %v922 = vpop.f32.mrb[0].mxu0
  %v923 = vadd.f32 %v803, %v922
  %v924 = vpop.f32.mrb[0].mxu0
  %925 = vmatprep.mubr.bf16.mxu0 %v211
  %926 = vmatmul.mubr.bf16.gmra.mrb[0].mxu0 %v210
  %v927 = vpop.f32.mrb[0].mxu0
  %v928 = vadd.f32 %v803, %v927
  %v929 = vpop.f32.mrb[0].mxu0
  %v930 = vpop.f32.mrb[0].mxu0
  %v931 = vadd.f32 %v803, %v930
  %v932 = vpop.f32.mrb[0].mxu0
  %933 = vmatprep.mubr.bf16.mxu0 %v213
  %934 = vmatmul.mubr.bf16.gmra.mrb[0].mxu0 %v212
  %v935 = vpop.f32.mrb[0].mxu0
  %v936 = vadd.f32 %v803, %v935
  %v937 = vpop.f32.mrb[0].mxu0
  %v938 = vpop.f32.mrb[0].mxu0
  %v939 = vadd.f32 %v803, %v938
  %v940 = vpop.f32.mrb[0].mxu0
  %941 = vmatprep.mubr.bf16.mxu0 %v215
  %942 = vmatmul.mubr.bf16.gmra.mrb[0].mxu0 %v214
  %v943 = vpop.f32.mrb[0].mxu0
  %v944 = vadd.f32 %v803, %v943
  %v945 = vpop.f32.mrb[0].mxu0
  %v946 = vpop.f32.mrb[0].mxu0
  %v947 = vadd.f32 %v803, %v946
  %v948 = vpop.f32.mrb[0].mxu0
  %949 = vmatprep.mubr.bf16.mxu0 %v217
  %950 = vmatmul.mubr.bf16.gmra.mrb[0].mxu0 %v216
  %v951 = vpop.f32.mrb[0].mxu0
  %v952 = vadd.f32 %v803, %v951
  %v953 = vpop.f32.mrb[0].mxu0
  %v954 = vpop.f32.mrb[0].mxu0
  %v955 = vadd.f32 %v803, %v954
  %v956 = vpop.f32.mrb[0].mxu0
  %957 = vmatprep.mubr.bf16.mxu0 %v219
  %958 = vmatmul.mubr.bf16.gmra.mrb[0].mxu0 %v218
  %v959 = vpop.f32.mrb[0].mxu0
  %v960 = vadd.f32 %v803, %v959
  %v961 = vpop.f32.mrb[0].mxu0
  %v962 = vpop.f32.mrb[0].mxu0
  %v963 = vadd.f32 %v803, %v962
  %v964 = vpop.f32.mrb[0].mxu0
  %965 = vdwg.mxu0
  %966 = vst [vmem:[%s5] sm:$0xff] %v840
  %967 = vst [vmem:[%s5 + $0x8] sm:$0xff] %v843
  %968 = vst [vmem:[%s5 + $0x10] sm:$0xff] %v848
  %969 = vst [vmem:[%s5 + $0x18] sm:$0xff] %v851
  %970 = vst [vmem:[%s5 + $0x20] sm:$0xff] %v856
  %971 = vst [vmem:[%s5 + $0x28] sm:$0xff] %v859
  %972 = vst [vmem:[%s5 + $0x30] sm:$0xff] %v864
  %973 = vst [vmem:[%s5 + $0x38] sm:$0xff] %v867
  %974 = vst [vmem:[%s5 + $0x40] sm:$0xff] %v872
  %975 = vst [vmem:[%s5 + $0x48] sm:$0xff] %v875
  %976 = vst [vmem:[%s5 + $0x50] sm:$0xff] %v880
  %977 = vst [vmem:[%s5 + $0x58] sm:$0xff] %v883
  %978 = vst [vmem:[%s5 + $0x60] sm:$0xff] %v888
  %979 = vst [vmem:[%s5 + $0x68] sm:$0xff] %v891
  %980 = vst [vmem:[%s5 + $0x70] sm:$0xff] %v896
  %981 = vst [vmem:[%s5 + $0x78] sm:$0xff] %v899
  %982 = vst [vmem:[%s5 + $0x80] sm:$0xff] %v904
  %983 = vst [vmem:[%s5 + $0x88] sm:$0xff] %v907
  %984 = vst [vmem:[%s5 + $0x90] sm:$0xff] %v912
  %985 = vst [vmem:[%s5 + $0x98] sm:$0xff] %v915
  %986 = vst [vmem:[%s5 + $0xa0] sm:$0xff] %v920
  %987 = vst [vmem:[%s5 + $0xa8] sm:$0xff] %v923
  %988 = vst [vmem:[%s5 + $0xb0] sm:$0xff] %v928
  %989 = vst [vmem:[%s5 + $0xb8] sm:$0xff] %v931
  %990 = vst [vmem:[%s5 + $0xc0] sm:$0xff] %v936
  %991 = vst [vmem:[%s5 + $0xc8] sm:$0xff] %v939
  %992 = vst [vmem:[%s5 + $0xd0] sm:$0xff] %v944
  %993 = vst [vmem:[%s5 + $0xd8] sm:$0xff] %v947
  %994 = vst [vmem:[%s5 + $0xe0] sm:$0xff] %v952
  %995 = vst [vmem:[%s5 + $0xe8] sm:$0xff] %v955
  %996 = vst [vmem:[%s5 + $0xf0] sm:$0xff] %v960
  %997 = vst [vmem:[%s5 + $0xf8] sm:$0xff] %v963
  // Predicated region
  $region22: #{encoder_forward.1} parent=0 // pred_check
    _
  $region23: #{encoder_forward.1} parent=0 // pred_check_branch
    %999 = sbr.rel (0) target = $region25
  $region24: #{encoder_forward.1} parent=0 // pred_region
    _
  $region25: #{encoder_forward.1} parent=0 // pred_fallthru
    _
  // Predicated region
  $region26: #{encoder_forward.1} parent=0 // pred_check
    _
  $region27: #{encoder_forward.1} parent=0 // pred_check_branch
    %1001 = sbr.rel (0) target = $region29
  $region28: #{encoder_forward.1} parent=0 // pred_region
    _
  $region29: #{encoder_forward.1} parent=0 // pred_fallthru
    _

</llo_original>
